<compile_context>
chip_gen: v7x
topology: tpu7x:2x2x1
jax: 0.10.0
libtpu: 0.0.40
codegen_flags: <defaults>
</compile_context>

<pallas_src>
import functools

import jax
import jax.numpy as jnp
from jax.experimental import pallas as pl
from jax.experimental.pallas import tpu as pltpu

H1 = 400   # hidden sizes of the original PyTorch Actor
H2 = 300


def _round_up(x, m):
    return (x + m - 1) // m * m


def _cdiv(a, b):
    return -(-a // b)


def _actor_kernel(state_ref, act_ref,
                  w1s_ref, w1a_ref, b1_ref,
                  w2_ref, b2_ref,
                  w3_ref, b3_ref,
                  out_ref, *, max_action, phi):
    # bf16 operands into the MXU, f32 accumulation, f32 epilogue.
    s16 = state_ref[...].astype(jnp.bfloat16)
    a16 = act_ref[...].astype(jnp.bfloat16)

    # h1 = relu([state, action] @ W1 + b1), with W1 split into state/action
    # parts (no concatenated input is ever materialized anywhere).
    h1 = (jnp.dot(s16, w1s_ref[...], preferred_element_type=jnp.float32)
          + jnp.dot(a16, w1a_ref[...], preferred_element_type=jnp.float32)
          + b1_ref[...])
    h1 = jnp.maximum(h1, 0.0).astype(jnp.bfloat16)

    h2 = jnp.dot(h1, w2_ref[...], preferred_element_type=jnp.float32) + b2_ref[...]
    h2 = jnp.maximum(h2, 0.0).astype(jnp.bfloat16)

    a = jnp.dot(h2, w3_ref[...], preferred_element_type=jnp.float32) + b3_ref[...]
    a = (max_action * phi) * jnp.tanh(a)          # single transcendental, f32 EUP

    out = act_ref[...] + a                        # residual stays exact f32
    out_ref[...] = jnp.clip(out, -max_action, max_action).astype(out_ref.dtype)


def actor_forward(state, action, params, *, max_action, phi=0.05, batch_tile=512):
    """Pallas wrapper. state: (B, state_dim), action: (B, action_dim)."""
    w1s, w1a, b1, w2, b2, w3, b3 = params
    B, state_dim = state.shape
    A = action.shape[1]

    state = state.astype(jnp.float32)
    action = action.astype(jnp.float32)

    # Balanced batch tiling:
    #   * n_steps = ceil(B / batch_tile), but at least 2 whenever B > 8 so the
    #     "parallel" grid axis has work for both v7x TensorCores,
    #   * TB = ceil(B / n_steps) rounded up to 8 (sublane alignment) keeps the
    #     padding waste below one sublane group per step.
    n_steps = _cdiv(B, batch_tile)
    if B > 8:
        n_steps = max(n_steps, 2)
    TB = _round_up(_cdiv(B, n_steps), 8)
    Bp = _round_up(B, TB)
    if Bp != B:
        pad = ((0, Bp - B), (0, 0))
        state = jnp.pad(state, pad)
        action = jnp.pad(action, pad)
    grid = Bp // TB

    kernel = functools.partial(_actor_kernel,
                               max_action=float(max_action), phi=float(phi))

    # Activations tile over the batch grid axis; weights/biases use a constant
    # block index so they are fetched into VMEM once and stay resident.
    def batch_spec(cols):
        return pl.BlockSpec((TB, cols), lambda i: (i, 0))

    def resident_spec(arr):
        return pl.BlockSpec(arr.shape, lambda i: (0, 0))

    weight_bytes = sum(int(p.size) * p.dtype.itemsize for p in params)
    flops = 2 * B * (state_dim * H1 + A * H1 + H1 * H2 + H2 * A)
    bytes_accessed = weight_bytes + int(B) * (state_dim + 2 * A) * 4

    out = pl.pallas_call(
        kernel,
        out_shape=jax.ShapeDtypeStruct((Bp, A), jnp.float32),
        grid_spec=pltpu.PrefetchScalarGridSpec(
            num_scalar_prefetch=0,
            grid=(grid,),
            in_specs=[batch_spec(state_dim), batch_spec(A),
                      resident_spec(w1s), resident_spec(w1a), resident_spec(b1),
                      resident_spec(w2), resident_spec(b2),
                      resident_spec(w3), resident_spec(b3)],
            out_specs=pl.BlockSpec((TB, A), lambda i: (i, 0)),
        ),
        compiler_params=pltpu.CompilerParams(
            dimension_semantics=("parallel",)),
        cost_estimate=pl.CostEstimate(
            flops=flops,
            transcendentals=B * A,
            bytes_accessed=bytes_accessed),
    )(state, action, w1s, w1a, b1, w2, b2, w3, b3)

    return out[:B]


def init_actor_params(key, state_dim, action_dim):
    """PyTorch-style uniform init.

    Weights are stored pre-transposed [in, out] and in bfloat16; biases stay
    float32 (the epilogue runs in f32).  The first layer's weight is split into
    a state part and an action part so no concatenated input is ever built.
    """
    in_dim = state_dim + action_dim
    k1, k2, k3, k4, k5, k6 = jax.random.split(key, 6)

    def uni(k, shape, fan_in):
        bound = 1.0 / (fan_in ** 0.5)
        return jax.random.uniform(k, shape, jnp.float32, -bound, bound)

    w1 = uni(k1, (in_dim, H1), in_dim)
    b1 = uni(k2, (1, H1), in_dim)
    w2 = uni(k3, (H1, H2), H1)
    b2 = uni(k4, (1, H2), H1)
    w3 = uni(k5, (H2, action_dim), H2)
    b3 = uni(k6, (1, action_dim), H2)

    w1s = w1[:state_dim].astype(jnp.bfloat16)     # (state_dim, 400)
    w1a = w1[state_dim:].astype(jnp.bfloat16)     # (action_dim, 400)
    return (w1s, w1a, b1,
            w2.astype(jnp.bfloat16), b2,
            w3.astype(jnp.bfloat16), b3)


def actor_forward_ref(state, action, params, *, max_action, phi=0.05):
    """Pure-JAX f32 reference (same bf16-stored weights, f32 activations)."""
    w1s, w1a, b1, w2, b2, w3, b3 = [p.astype(jnp.float32) for p in params]
    h1 = jax.nn.relu(state @ w1s + action @ w1a + b1)
    h2 = jax.nn.relu(h1 @ w2 + b2)
    a = h2 @ w3 + b3
    a = max_action * jnp.tanh(a) * phi
    return jnp.clip(action + a, -max_action, max_action)


if __name__ == "__main__":
    key = jax.random.PRNGKey(0)
    kp, ks, ka, ks2, ka2 = jax.random.split(key, 5)

    state_dim = 16
    action_dim = 4
    max_action = 1.0
    phi = 0.05

    params = init_actor_params(kp, state_dim, action_dim)

    # Case 1: tiny batch (single grid step, no padding).
    b1_ = 8
    state = jax.random.normal(ks, (b1_, state_dim), jnp.float32)
    action = jax.random.uniform(ka, (b1_, action_dim), jnp.float32,
                                -max_action, max_action)
    out = actor_forward(state, action, params, max_action=max_action, phi=phi)
    out = jax.block_until_ready(out)
    ref = actor_forward_ref(state, action, params, max_action=max_action, phi=phi)
    assert out.shape == (b1_, action_dim)
    assert jnp.allclose(out, ref, atol=1e-2, rtol=1e-2), "mismatch (B=8)"

    # Case 2: exercises balanced tiling (>=2 grid steps + padded last tile).
    b2_ = 40
    state2 = jax.random.normal(ks2, (b2_, state_dim), jnp.float32)
    action2 = jax.random.uniform(ka2, (b2_, action_dim), jnp.float32,
                                 -max_action, max_action)
    out2 = actor_forward(state2, action2, params, max_action=max_action, phi=phi)
    out2 = jax.block_until_ready(out2)
    ref2 = actor_forward_ref(state2, action2, params, max_action=max_action, phi=phi)
    assert out2.shape == (b2_, action_dim)
    assert jnp.allclose(out2, ref2, atol=1e-2, rtol=1e-2), "mismatch (B=40)"

    print("KERNEL_OK")
</pallas_src>

<mosaic_0001>
module attributes {stable_mosaic.version = 11 : i64} {
  func.func @_actor_kernel(%arg0: i32, %arg1: memref<8x16xf32, #tpu.memory_space<vmem>>, %arg2: memref<8x4xf32, #tpu.memory_space<vmem>>, %arg3: memref<16x400xbf16, #tpu.memory_space<vmem>>, %arg4: memref<4x400xbf16, #tpu.memory_space<vmem>>, %arg5: memref<1x400xf32, #tpu.memory_space<vmem>>, %arg6: memref<400x300xbf16, #tpu.memory_space<vmem>>, %arg7: memref<1x300xf32, #tpu.memory_space<vmem>>, %arg8: memref<300x4xbf16, #tpu.memory_space<vmem>>, %arg9: memref<1x4xf32, #tpu.memory_space<vmem>>, %arg10: memref<8x4xf32, #tpu.memory_space<vmem>>) attributes {dimension_semantics = [#tpu.dimension_semantics<parallel>], iteration_bounds = array<i64: 1>, scalar_prefetch = 0 : i64, scratch_operands = 0 : i64, tpu.core_type = #tpu.core_type<tc>, window_params = [{transform_indices = @transform_0, window_bounds = array<i64: 8, 16>}, {transform_indices = @transform_1, window_bounds = array<i64: 8, 4>}, {pipeline_mode = #tpu.pipeline_mode<synchronous>, transform_indices = @transform_2, window_bounds = array<i64: 16, 400>}, {pipeline_mode = #tpu.pipeline_mode<synchronous>, transform_indices = @transform_3, window_bounds = array<i64: 4, 400>}, {pipeline_mode = #tpu.pipeline_mode<synchronous>, transform_indices = @transform_4, window_bounds = array<i64: 1, 400>}, {pipeline_mode = #tpu.pipeline_mode<synchronous>, transform_indices = @transform_5, window_bounds = array<i64: 400, 300>}, {pipeline_mode = #tpu.pipeline_mode<synchronous>, transform_indices = @transform_6, window_bounds = array<i64: 1, 300>}, {pipeline_mode = #tpu.pipeline_mode<synchronous>, transform_indices = @transform_7, window_bounds = array<i64: 300, 4>}, {pipeline_mode = #tpu.pipeline_mode<synchronous>, transform_indices = @transform_8, window_bounds = array<i64: 1, 4>}, {transform_indices = @transform_9, window_bounds = array<i64: 8, 4>}]} {
    %c0 = arith.constant 0 : index
    %c0_0 = arith.constant 0 : index
    %0 = vector.load %arg1[%c0, %c0_0] : memref<8x16xf32, #tpu.memory_space<vmem>>, vector<8x16xf32>
    %1 = arith.truncf %0 : vector<8x16xf32> to vector<8x16xbf16>
    %c0_1 = arith.constant 0 : index
    %c0_2 = arith.constant 0 : index
    %2 = vector.load %arg2[%c0_1, %c0_2] : memref<8x4xf32, #tpu.memory_space<vmem>>, vector<8x4xf32>
    %3 = arith.truncf %2 : vector<8x4xf32> to vector<8x4xbf16>
    %c0_3 = arith.constant 0 : index
    %c0_4 = arith.constant 0 : index
    %4 = vector.load %arg3[%c0_3, %c0_4] : memref<16x400xbf16, #tpu.memory_space<vmem>>, vector<16x400xbf16>
    %cst = arith.constant dense<0.000000e+00> : vector<8x400xf32>
    %5 = tpu.matmul %1, %4, %cst {dimension_numbers = #tpu.dot_dimension_numbers<[1], [0], [0], [1], [0, 0, 1, 1], [], []>} : vector<8x16xbf16>, vector<16x400xbf16>, vector<8x400xf32> -> vector<8x400xf32>
    %c0_5 = arith.constant 0 : index
    %c0_6 = arith.constant 0 : index
    %6 = vector.load %arg4[%c0_5, %c0_6] : memref<4x400xbf16, #tpu.memory_space<vmem>>, vector<4x400xbf16>
    %cst_7 = arith.constant dense<0.000000e+00> : vector<8x400xf32>
    %7 = tpu.matmul %3, %6, %cst_7 {dimension_numbers = #tpu.dot_dimension_numbers<[1], [0], [0], [1], [0, 0, 1, 1], [], []>} : vector<8x4xbf16>, vector<4x400xbf16>, vector<8x400xf32> -> vector<8x400xf32>
    %8 = arith.addf %5, %7 : vector<8x400xf32>
    %c0_8 = arith.constant 0 : index
    %c0_9 = arith.constant 0 : index
    %9 = vector.load %arg5[%c0_8, %c0_9] : memref<1x400xf32, #tpu.memory_space<vmem>>, vector<1x400xf32>
    %10 = vector.broadcast %9 : vector<1x400xf32> to vector<8x400xf32>
    %11 = arith.addf %8, %10 : vector<8x400xf32>
    %cst_10 = arith.constant 0.000000e+00 : f32
    %12 = vector.broadcast %cst_10 : f32 to vector<8x400xf32>
    %13 = arith.maximumf %11, %12 : vector<8x400xf32>
    %14 = arith.truncf %13 : vector<8x400xf32> to vector<8x400xbf16>
    %c0_11 = arith.constant 0 : index
    %c0_12 = arith.constant 0 : index
    %15 = vector.load %arg6[%c0_11, %c0_12] : memref<400x300xbf16, #tpu.memory_space<vmem>>, vector<400x300xbf16>
    %cst_13 = arith.constant dense<0.000000e+00> : vector<8x300xf32>
    %16 = tpu.matmul %14, %15, %cst_13 {dimension_numbers = #tpu.dot_dimension_numbers<[1], [0], [0], [1], [0, 0, 1, 1], [], []>} : vector<8x400xbf16>, vector<400x300xbf16>, vector<8x300xf32> -> vector<8x300xf32>
    %c0_14 = arith.constant 0 : index
    %c0_15 = arith.constant 0 : index
    %17 = vector.load %arg7[%c0_14, %c0_15] : memref<1x300xf32, #tpu.memory_space<vmem>>, vector<1x300xf32>
    %18 = vector.broadcast %17 : vector<1x300xf32> to vector<8x300xf32>
    %19 = arith.addf %16, %18 : vector<8x300xf32>
    %cst_16 = arith.constant 0.000000e+00 : f32
    %20 = vector.broadcast %cst_16 : f32 to vector<8x300xf32>
    %21 = arith.maximumf %19, %20 : vector<8x300xf32>
    %22 = arith.truncf %21 : vector<8x300xf32> to vector<8x300xbf16>
    %c0_17 = arith.constant 0 : index
    %c0_18 = arith.constant 0 : index
    %23 = vector.load %arg8[%c0_17, %c0_18] : memref<300x4xbf16, #tpu.memory_space<vmem>>, vector<300x4xbf16>
    %cst_19 = arith.constant dense<0.000000e+00> : vector<8x4xf32>
    %24 = tpu.matmul %22, %23, %cst_19 {dimension_numbers = #tpu.dot_dimension_numbers<[1], [0], [0], [1], [0, 0, 1, 1], [], []>} : vector<8x300xbf16>, vector<300x4xbf16>, vector<8x4xf32> -> vector<8x4xf32>
    %c0_20 = arith.constant 0 : index
    %c0_21 = arith.constant 0 : index
    %25 = vector.load %arg9[%c0_20, %c0_21] : memref<1x4xf32, #tpu.memory_space<vmem>>, vector<1x4xf32>
    %26 = vector.broadcast %25 : vector<1x4xf32> to vector<8x4xf32>
    %27 = arith.addf %24, %26 : vector<8x4xf32>
    %28 = math.tanh %27 : vector<8x4xf32>
    %cst_22 = arith.constant 5.000000e-02 : f32
    %29 = vector.broadcast %cst_22 : f32 to vector<8x4xf32>
    %30 = arith.mulf %29, %28 : vector<8x4xf32>
    %c0_23 = arith.constant 0 : index
    %c0_24 = arith.constant 0 : index
    %31 = vector.load %arg2[%c0_23, %c0_24] : memref<8x4xf32, #tpu.memory_space<vmem>>, vector<8x4xf32>
    %32 = arith.addf %31, %30 : vector<8x4xf32>
    %cst_25 = arith.constant -1.000000e+00 : f32
    %cst_26 = arith.constant 1.000000e+00 : f32
    %33 = vector.broadcast %cst_25 : f32 to vector<8x4xf32>
    %34 = arith.maximumf %33, %32 : vector<8x4xf32>
    %35 = vector.broadcast %cst_26 : f32 to vector<8x4xf32>
    %36 = arith.minimumf %35, %34 : vector<8x4xf32>
    %c0_27 = arith.constant 0 : index
    %c0_28 = arith.constant 0 : index
    %37 = vector.load %arg10[%c0_27, %c0_28] : memref<8x4xf32, #tpu.memory_space<vmem>>, vector<8x4xf32>
    tpu.vector_store %arg10[%c0_27, %c0_28], %36 {strides = array<i32>} : memref<8x4xf32, #tpu.memory_space<vmem>>, vector<8x4xf32>,
    return
  }
  func.func @transform_0(%arg0: i32) -> (i32, i32) {
    %c0_i32 = arith.constant 0 : i32
    %c0_i32_0 = arith.constant 0 : i32
    return %arg0, %c0_i32 : i32, i32
  }
  func.func @transform_1(%arg0: i32) -> (i32, i32) {
    %c0_i32 = arith.constant 0 : i32
    %c0_i32_0 = arith.constant 0 : i32
    return %arg0, %c0_i32 : i32, i32
  }
  func.func @transform_2(%arg0: i32) -> (i32, i32) {
    %c0_i32 = arith.constant 0 : i32
    %c0_i32_0 = arith.constant 0 : i32
    %c0_i32_1 = arith.constant 0 : i32
    return %c0_i32, %c0_i32_0 : i32, i32
  }
  func.func @transform_3(%arg0: i32) -> (i32, i32) {
    %c0_i32 = arith.constant 0 : i32
    %c0_i32_0 = arith.constant 0 : i32
    %c0_i32_1 = arith.constant 0 : i32
    return %c0_i32, %c0_i32_0 : i32, i32
  }
  func.func @transform_4(%arg0: i32) -> (i32, i32) {
    %c0_i32 = arith.constant 0 : i32
    %c0_i32_0 = arith.constant 0 : i32
    %c0_i32_1 = arith.constant 0 : i32
    return %c0_i32, %c0_i32_0 : i32, i32
  }
  func.func @transform_5(%arg0: i32) -> (i32, i32) {
    %c0_i32 = arith.constant 0 : i32
    %c0_i32_0 = arith.constant 0 : i32
    %c0_i32_1 = arith.constant 0 : i32
    return %c0_i32, %c0_i32_0 : i32, i32
  }
  func.func @transform_6(%arg0: i32) -> (i32, i32) {
    %c0_i32 = arith.constant 0 : i32
    %c0_i32_0 = arith.constant 0 : i32
    %c0_i32_1 = arith.constant 0 : i32
    return %c0_i32, %c0_i32_0 : i32, i32
  }
  func.func @transform_7(%arg0: i32) -> (i32, i32) {
    %c0_i32 = arith.constant 0 : i32
    %c0_i32_0 = arith.constant 0 : i32
    %c0_i32_1 = arith.constant 0 : i32
    return %c0_i32, %c0_i32_0 : i32, i32
  }
  func.func @transform_8(%arg0: i32) -> (i32, i32) {
    %c0_i32 = arith.constant 0 : i32
    %c0_i32_0 = arith.constant 0 : i32
    %c0_i32_1 = arith.constant 0 : i32
    return %c0_i32, %c0_i32_0 : i32, i32
  }
  func.func @transform_9(%arg0: i32) -> (i32, i32) {
    %c0_i32 = arith.constant 0 : i32
    %c0_i32_0 = arith.constant 0 : i32
    return %arg0, %c0_i32 : i32, i32
  }
}

</mosaic_0001>

<llo_original>
// kernel: tpu_custom_call.1
$region0: #{tpu_custom_call.1}
  #allocation0 [shape = 'u32[]', space=smem, size = 0x4, offset = 0x4, fixed_abs, tag = 'smem constant byte address 0x4 - core index']
  #allocation1 [shape = 'u32[144,128]{1,0:T(1,128)}', space=vmem, size = 0x12000, scoped, tag = 'internal scratch']
  %s0 = inlined_call_operand.vmem [shape: f32[8,16], index: 0, kind: input, shape index: {}]
  %s1 = inlined_call_operand.vmem [shape: f32[8,4], index: 1, kind: input, shape index: {}]
  %s2 = inlined_call_operand.vmem [shape: bf16[16,400], index: 2, kind: input, shape index: {}]
  %s3 = inlined_call_operand.vmem [shape: bf16[4,400], index: 3, kind: input, shape index: {}]
  %s4 = inlined_call_operand.vmem [shape: f32[1,400], index: 4, kind: input, shape index: {}]
  %s5 = inlined_call_operand.hbm [shape: bf16[400,300], index: 5, kind: input, shape index: {}]
  %s6 = inlined_call_operand.vmem [shape: f32[1,300], index: 6, kind: input, shape index: {}]
  %s7 = inlined_call_operand.vmem [shape: bf16[300,4], index: 7, kind: input, shape index: {}]
  %s8 = inlined_call_operand.vmem [shape: f32[1,4], index: 8, kind: input, shape index: {}]
  %s9 = inlined_call_operand.vmem [shape: f32[8,4], index: 9, kind: output, shape index: {}]
  %s10 = sld [smem:[#allocation0]]
  $region50: #{tpu_custom_call.1} parent=0
    _
  %s12 = ssub.s32 1, %s10
  %s13 = scalar_select 0, %s12, %s10
  $region1: #{tpu_custom_call.1} parent=0
    #allocation2 [shape = 'u8[307200]{0}', space=vmem, size = 0x4b000, scoped, tag = 'input window, operand 5, single buffered']
    #allocation3 [shape = 's32[1]{0}', space=sflag, size = 0x4, scoped, tag = 'scoped memory for tpu_custom_call.1']
    %14 = vsyncpa [#allocation3], 0
    // Predicated region
    $region2: #{tpu_custom_call.1} parent=1 // pred_check
      _
    $region3: #{tpu_custom_call.1} parent=1 // pred_check_branch
      %16 = sbr.rel (0) target = $region5
    $region4: #{tpu_custom_call.1} parent=1 // pred_region
      _
    $region5: #{tpu_custom_call.1} parent=1 // pred_fallthru
      _
    // Predicated region
    $region6: #{tpu_custom_call.1} parent=1 // pred_check
      _
    $region7: #{tpu_custom_call.1} parent=1 // pred_check_branch
      %18 = sbr.rel (0) target = $region9
    $region8: #{tpu_custom_call.1} parent=1 // pred_region
      _
    $region9: #{tpu_custom_call.1} parent=1 // pred_fallthru
      _
    // Predicated region
    $region10: #{tpu_custom_call.1} parent=1 // pred_check
      _
    $region11: #{tpu_custom_call.1} parent=1 // pred_check_branch
      %20 = sbr.rel (0) target = $region13
    $region12: #{tpu_custom_call.1} parent=1 // pred_region
      _
    $region13: #{tpu_custom_call.1} parent=1 // pred_fallthru
      _
    // Predicated region
    $region14: #{tpu_custom_call.1} parent=1 // pred_check
      _
    $region15: #{tpu_custom_call.1} parent=1 // pred_check_branch
      %22 = sbr.rel (0) target = $region17
    $region16: #{tpu_custom_call.1} parent=1 // pred_region
      _
    $region17: #{tpu_custom_call.1} parent=1 // pred_fallthru
      _
    // Predicated region
    $region18: #{tpu_custom_call.1} parent=1 // pred_check
      _
    $region19: #{tpu_custom_call.1} parent=1 // pred_check_branch
      %24 = sbr.rel (0) target = $region21
    $region20: #{tpu_custom_call.1} parent=1 // pred_region
      _
    $region21: #{tpu_custom_call.1} parent=1 // pred_fallthru
      _
    // Predicated region
    $region22: #{tpu_custom_call.1} parent=1 // pred_check
      _
    $region23: #{tpu_custom_call.1} parent=1 // pred_check_branch
      %26 = sbr.rel (0) target = $region25
    $region24: #{tpu_custom_call.1} parent=1 // pred_region
      %s28 = ssub.s32 9600, 9600
      %29 = vsyncadd [#allocation3], %s28
      %s30 = sshll.u32 [#allocation2], 4
      %s31 = int_to_ptr.vmem [resolvable:$true] %s30
      %36 = dma.hbm_to_vmem [thread:$0]  %s5, 9600, %s31, [#allocation3], 192, 192, 12
    $region25: #{tpu_custom_call.1} parent=1 // pred_fallthru
      _
    // Predicated region
    $region26: #{tpu_custom_call.1} parent=1 // pred_check
      _
    $region27: #{tpu_custom_call.1} parent=1 // pred_check_branch
      %38 = sbr.rel (0) target = $region29
    $region28: #{tpu_custom_call.1} parent=1 // pred_region
      _
    $region29: #{tpu_custom_call.1} parent=1 // pred_fallthru
      _
    // Predicated region
    $region30: #{tpu_custom_call.1} parent=1 // pred_check
      _
    $region31: #{tpu_custom_call.1} parent=1 // pred_check_branch
      %40 = sbr.rel (0) target = $region33
    $region32: #{tpu_custom_call.1} parent=1 // pred_region
      _
    $region33: #{tpu_custom_call.1} parent=1 // pred_fallthru
      _
    // Predicated region
    $region34: #{tpu_custom_call.1} parent=1 // pred_check
      _
    $region35: #{tpu_custom_call.1} parent=1 // pred_check_branch
      %42 = sbr.rel (0) target = $region37
    $region36: #{tpu_custom_call.1} parent=1 // pred_region
      _
    $region37: #{tpu_custom_call.1} parent=1 // pred_fallthru
      _
    // Predicated region
    $region38: #{tpu_custom_call.1} parent=1 // pred_check
      _
    $region39: #{tpu_custom_call.1} parent=1 // pred_check_branch
      %44 = sbr.rel (0) target = $region41
    $region40: #{tpu_custom_call.1} parent=1 // pred_region
      %45 = dma.done [#allocation3], 9600
    $region41: #{tpu_custom_call.1} parent=1 // pred_fallthru
      _
    %v47 = vld [vmem:[%s0] sm:$0xff]
    %v48 = vpack.c.bf16 %v47, %v47
    %v49 = vld [vmem:[%s1] sm:$0xff]
    %v50 = vpack.c.bf16 %v49, %v49
    %v51 = vld [vmem:[%s2] sm:$0xff]
    %v52 = vld [vmem:[%s2 + $0x8] sm:$0xff]
    %v53 = vld [vmem:[%s2 + $0x10] sm:$0xff]
    %v54 = vld [vmem:[%s2 + $0x18] sm:$0xff]
    %v55 = vld [vmem:[%s3] sm:$0xff]
    %v57 = vcombine.high %v55, %v55
    %v59 = vunpack.c.l.s4 1983009808
    %v60 = vunpack.c.0.s8 %v59
    %v61 = vlaneseq
    %v62 = vshrl.u32 %v61, 7
    %v63 = vsub.s32 %v60, %v62
    %v64 = vrot.slane %v55, %v63
    %v66 = vunpack.c.l.s4 1983009808
    %v67 = vunpack.c.0.s8 %v66
    %v68 = vlaneseq
    %v69 = vshrl.u32 %v68, 7
    %v70 = vsub.s32 %v67, %v69
    %v71 = vrot.slane %v57, %v70
    %v72 = vcombine.high %v64, %v64
    %v73 = vcombine.high %v71, %v71
    %vm74 = vcmask 31744
    %v76 = vsel %vm74, %v50, 0
    %vm78 = vcmask 1041408
    %v80 = vsel %vm78, %v64, 0
    %v83 = vsel %vm78, %v72, 0
    %v86 = vsel %vm78, %v71, 0
    %v89 = vsel %vm78, %v73, 0
    %91 = vmatprep.subr.bf16.mxu0 %v83
    %92 = vmatpush1.bf16.msra.mxu0 %v80
    %93 = vmatprep.subr.bf16.mxu0 0
    %94 = vmatpush1.bf16.msra.mxu0 0
    %95 = vmatprep.subr.bf16.mxu0 0
    %96 = vmatpush1.bf16.msra.mxu0 0
    %97 = vmatprep.subr.bf16.mxu0 0
    %98 = vmatpush1.bf16.msra.mxu0 0
    %99 = vmatprep.subr.bf16.mxu0 0
    %100 = vmatpush1.bf16.msra.mxu0 0
    %101 = vmatprep.subr.bf16.mxu0 0
    %102 = vmatpush1.bf16.msra.mxu0 0
    %103 = vmatprep.subr.bf16.mxu0 0
    %104 = vmatpush1.bf16.msra.mxu0 0
    %105 = vmatprep.subr.bf16.mxu0 0
    %106 = vmatpush1.bf16.msra.mxu0 0
    %107 = vmatprep.subr.bf16.mxu0 0
    %108 = vmatpush1.bf16.msra.mxu0 0
    %109 = vmatprep.subr.bf16.mxu0 0
    %110 = vmatpush1.bf16.msra.mxu0 0
    %111 = vmatprep.subr.bf16.mxu0 0
    %112 = vmatpush1.bf16.msra.mxu0 0
    %113 = vmatprep.subr.bf16.mxu0 0
    %114 = vmatpush1.bf16.msra.mxu0 0
    %115 = vmatprep.subr.bf16.mxu0 0
    %116 = vmatpush1.bf16.msra.mxu0 0
    %117 = vmatprep.subr.bf16.mxu0 0
    %118 = vmatpush1.bf16.msra.mxu0 0
    %119 = vmatprep.subr.bf16.mxu0 0
    %120 = vmatpush1.bf16.msra.mxu0 0
    %121 = vmatprep.subr.bf16.mxu0 0
    %122 = vmatpush1.bf16.msra.mxu0 0
    %123 = vmatprep.mubr.bf16.mxu0 0
    %124 = vmatmul.mubr.bf16.gmra.mrb[0].mxu0 %v76
    %v125 = vpop.f32.mrb[0].mxu0
    %v126 = vadd.f32 0.0, %v125
    %v127 = vpop.f32.mrb[0].mxu0
    %v128 = vadd.f32 0.0, %v127
    %v129 = vpop.f32.mrb[0].mxu0
    %v130 = vpop.f32.mrb[0].mxu0
    %131 = vdwg.mxu0
    %132 = vmatprep.subr.bf16.mxu0 %v89
    %133 = vmatpush1.bf16.msra.mxu0 %v86
    %134 = vmatprep.subr.bf16.mxu0 0
    %135 = vmatpush1.bf16.msra.mxu0 0
    %136 = vmatprep.subr.bf16.mxu0 0
    %137 = vmatpush1.bf16.msra.mxu0 0
    %138 = vmatprep.subr.bf16.mxu0 0
    %139 = vmatpush1.bf16.msra.mxu0 0
    %140 = vmatprep.subr.bf16.mxu0 0
    %141 = vmatpush1.bf16.msra.mxu0 0
    %142 = vmatprep.subr.bf16.mxu0 0
    %143 = vmatpush1.bf16.msra.mxu0 0
    %144 = vmatprep.subr.bf16.mxu0 0
    %145 = vmatpush1.bf16.msra.mxu0 0
    %146 = vmatprep.subr.bf16.mxu0 0
    %147 = vmatpush1.bf16.msra.mxu0 0
    %148 = vmatprep.subr.bf16.mxu0 0
    %149 = vmatpush1.bf16.msra.mxu0 0
    %150 = vmatprep.subr.bf16.mxu0 0
    %151 = vmatpush1.bf16.msra.mxu0 0
    %152 = vmatprep.subr.bf16.mxu0 0
    %153 = vmatpush1.bf16.msra.mxu0 0
    %154 = vmatprep.subr.bf16.mxu0 0
    %155 = vmatpush1.bf16.msra.mxu0 0
    %156 = vmatprep.subr.bf16.mxu0 0
    %157 = vmatpush1.bf16.msra.mxu0 0
    %158 = vmatprep.subr.bf16.mxu0 0
    %159 = vmatpush1.bf16.msra.mxu0 0
    %160 = vmatprep.subr.bf16.mxu0 0
    %161 = vmatpush1.bf16.msra.mxu0 0
    %162 = vmatprep.subr.bf16.mxu0 0
    %163 = vmatpush1.bf16.msra.mxu0 0
    %164 = vmatprep.mubr.bf16.mxu0 0
    %165 = vmatmul.mubr.bf16.gmra.mrb[0].mxu0 %v76
    %v166 = vpop.f32.mrb[0].mxu0
    %v167 = vadd.f32 0.0, %v166
    %v168 = vpop.f32.mrb[0].mxu0
    %v169 = vadd.f32 0.0, %v168
    %v170 = vpop.f32.mrb[0].mxu0
    %v171 = vpop.f32.mrb[0].mxu0
    %172 = vdwg.mxu0
    %v177 = vunpack.c.l.b16 %v51
    %v178 = vunpack.c.h.b16 %v51
    %v179 = vunpack.c.l.b16 %v52
    %v180 = vunpack.c.h.b16 %v52
    %v181 = vunpack.c.l.b16 %v53
    %v182 = vunpack.c.h.b16 %v53
    %v183 = vunpack.c.l.b16 %v54
    %v184 = vunpack.c.h.b16 %v54
    %v185 = vpack.c.b16 %v181, %v177
    %v186 = vpack.c.b16 %v182, %v178
    %v187 = vpack.c.b16 %v183, %v179
    %v188 = vpack.c.b16 %v184, %v180
    %vm193 = vcmask 130048
    %v195 = vsel %vm193, %v48, 0
    %197 = vmatprep.subr.bf16.mxu0 %v186
    %198 = vmatpush1.bf16.msra.mxu0 %v185
    %199 = vmatprep.subr.bf16.mxu0 0
    %200 = vmatpush1.bf16.msra.mxu0 0
    %201 = vmatprep.subr.bf16.mxu0 0
    %202 = vmatpush1.bf16.msra.mxu0 0
    %203 = vmatprep.subr.bf16.mxu0 0
    %204 = vmatpush1.bf16.msra.mxu0 0
    %205 = vmatprep.subr.bf16.mxu0 0
    %206 = vmatpush1.bf16.msra.mxu0 0
    %207 = vmatprep.subr.bf16.mxu0 0
    %208 = vmatpush1.bf16.msra.mxu0 0
    %209 = vmatprep.subr.bf16.mxu0 0
    %210 = vmatpush1.bf16.msra.mxu0 0
    %211 = vmatprep.subr.bf16.mxu0 0
    %212 = vmatpush1.bf16.msra.mxu0 0
    %213 = vmatprep.subr.bf16.mxu0 0
    %214 = vmatpush1.bf16.msra.mxu0 0
    %215 = vmatprep.subr.bf16.mxu0 0
    %216 = vmatpush1.bf16.msra.mxu0 0
    %217 = vmatprep.subr.bf16.mxu0 0
    %218 = vmatpush1.bf16.msra.mxu0 0
    %219 = vmatprep.subr.bf16.mxu0 0
    %220 = vmatpush1.bf16.msra.mxu0 0
    %221 = vmatprep.subr.bf16.mxu0 0
    %222 = vmatpush1.bf16.msra.mxu0 0
    %223 = vmatprep.subr.bf16.mxu0 0
    %224 = vmatpush1.bf16.msra.mxu0 0
    %225 = vmatprep.subr.bf16.mxu0 0
    %226 = vmatpush1.bf16.msra.mxu0 0
    %227 = vmatprep.subr.bf16.mxu0 0
    %228 = vmatpush1.bf16.msra.mxu0 0
    %229 = vmatprep.mubr.bf16.mxu0 0
    %230 = vmatmul.mubr.bf16.gmra.mrb[0].mxu0 %v195
    %v231 = vpop.f32.mrb[0].mxu0
    %v232 = vadd.f32 %v126, %v231
    %v233 = vpop.f32.mrb[0].mxu0
    %v234 = vadd.f32 %v128, %v233
    %v235 = vpop.f32.mrb[0].mxu0
    %v236 = vpop.f32.mrb[0].mxu0
    %237 = vdwg.mxu0
    %238 = vmatprep.subr.bf16.mxu0 %v188
    %239 = vmatpush1.bf16.msra.mxu0 %v187
    %240 = vmatprep.subr.bf16.mxu0 0
    %241 = vmatpush1.bf16.msra.mxu0 0
    %242 = vmatprep.subr.bf16.mxu0 0
    %243 = vmatpush1.bf16.msra.mxu0 0
    %244 = vmatprep.subr.bf16.mxu0 0
    %245 = vmatpush1.bf16.msra.mxu0 0
    %246 = vmatprep.subr.bf16.mxu0 0
    %247 = vmatpush1.bf16.msra.mxu0 0
    %248 = vmatprep.subr.bf16.mxu0 0
    %249 = vmatpush1.bf16.msra.mxu0 0
    %250 = vmatprep.subr.bf16.mxu0 0
    %251 = vmatpush1.bf16.msra.mxu0 0
    %252 = vmatprep.subr.bf16.mxu0 0
    %253 = vmatpush1.bf16.msra.mxu0 0
    %254 = vmatprep.subr.bf16.mxu0 0
    %255 = vmatpush1.bf16.msra.mxu0 0
    %256 = vmatprep.subr.bf16.mxu0 0
    %257 = vmatpush1.bf16.msra.mxu0 0
    %258 = vmatprep.subr.bf16.mxu0 0
    %259 = vmatpush1.bf16.msra.mxu0 0
    %260 = vmatprep.subr.bf16.mxu0 0
    %261 = vmatpush1.bf16.msra.mxu0 0
    %262 = vmatprep.subr.bf16.mxu0 0
    %263 = vmatpush1.bf16.msra.mxu0 0
    %264 = vmatprep.subr.bf16.mxu0 0
    %265 = vmatpush1.bf16.msra.mxu0 0
    %266 = vmatprep.subr.bf16.mxu0 0
    %267 = vmatpush1.bf16.msra.mxu0 0
    %268 = vmatprep.subr.bf16.mxu0 0
    %269 = vmatpush1.bf16.msra.mxu0 0
    %270 = vmatprep.mubr.bf16.mxu0 0
    %271 = vmatmul.mubr.bf16.gmra.mrb[0].mxu0 %v195
    %v272 = vpop.f32.mrb[0].mxu0
    %v273 = vadd.f32 %v167, %v272
    %v274 = vpop.f32.mrb[0].mxu0
    %v275 = vadd.f32 %v169, %v274
    %v276 = vpop.f32.mrb[0].mxu0
    %v277 = vpop.f32.mrb[0].mxu0
    %278 = vdwg.mxu0
    %v279 = vld [vmem:[%s4] sm:$0xf]
    %v281 = vlaneseq
    %v282 = vshrl.u32 %v281, 7
    %v283 = vsub.s32 0, %v282
    %v284 = vrot.slane %v279, %v283
    %v285 = vlaneseq
    %v286 = vshrl.u32 %v285, 7
    %v287 = vsub.s32 1, %v286
    %v288 = vrot.slane %v279, %v287
    %v289 = vlaneseq
    %v290 = vshrl.u32 %v289, 7
    %v291 = vsub.s32 2, %v290
    %v292 = vrot.slane %v279, %v291
    %v293 = vlaneseq
    %v294 = vshrl.u32 %v293, 7
    %v295 = vsub.s32 3, %v294
    %v296 = vrot.slane %v279, %v295
    %v301 = vadd.f32 %v232, %v284
    %v302 = vadd.f32 %v234, %v288
    %v303 = vadd.f32 %v273, %v292
    %v304 = vadd.f32 %v275, %v296
    %v305 = vmax.f32 %v301, 0.0
    %v306 = vmax.f32 %v302, 0.0
    %v307 = vmax.f32 %v303, 0.0
    %v308 = vmax.f32 %v304, 0.0
    %v309 = vpack.c.bf16 %v305, %v305
    %v310 = vpack.c.bf16 %v306, %v306
    %v311 = vpack.c.bf16 %v307, %v307
    %v312 = vpack.c.bf16 %v308, %v308
    %v313 = vld [vmem:[#allocation2] sm:$0xff]
    %v314 = vld [vmem:[#allocation2 + $0x8] sm:$0xf]
    %v315 = vld [vmem:[#allocation2 + $0xc] sm:$0xff]
    %v316 = vld [vmem:[#allocation2 + $0x14] sm:$0xf]
    %v317 = vld [vmem:[#allocation2 + $0x18] sm:$0xff]
    %v318 = vld [vmem:[#allocation2 + $0x20] sm:$0xf]
    %v319 = vld [vmem:[#allocation2 + $0x24] sm:$0xff]
    %v320 = vld [vmem:[#allocation2 + $0x2c] sm:$0xf]
    %v321 = vld [vmem:[#allocation2 + $0x30] sm:$0xff]
    %v322 = vld [vmem:[#allocation2 + $0x38] sm:$0xf]
    %v323 = vld [vmem:[#allocation2 + $0x3c] sm:$0xff]
    %v324 = vld [vmem:[#allocation2 + $0x44] sm:$0xf]
    %v325 = vld [vmem:[#allocation2 + $0x48] sm:$0xff]
    %v326 = vld [vmem:[#allocation2 + $0x50] sm:$0xf]
    %v327 = vld [vmem:[#allocation2 + $0x54] sm:$0xff]
    %v328 = vld [vmem:[#allocation2 + $0x5c] sm:$0xf]
    %v329 = vld [vmem:[#allocation2 + $0x60] sm:$0xff]
    %v330 = vld [vmem:[#allocation2 + $0x68] sm:$0xf]
    %v331 = vld [vmem:[#allocation2 + $0x6c] sm:$0xff]
    %v332 = vld [vmem:[#allocation2 + $0x74] sm:$0xf]
    %v333 = vld [vmem:[#allocation2 + $0x78] sm:$0xff]
    %v334 = vld [vmem:[#allocation2 + $0x80] sm:$0xf]
    %v335 = vld [vmem:[#allocation2 + $0x84] sm:$0xff]
    %v336 = vld [vmem:[#allocation2 + $0x8c] sm:$0xf]
    %v337 = vld [vmem:[#allocation2 + $0x90] sm:$0xff]
    %v338 = vld [vmem:[#allocation2 + $0x98] sm:$0xf]
    %v339 = vld [vmem:[#allocation2 + $0x9c] sm:$0xff]
    %v340 = vld [vmem:[#allocation2 + $0xa4] sm:$0xf]
    %v341 = vld [vmem:[#allocation2 + $0xa8] sm:$0xff]
    %v342 = vld [vmem:[#allocation2 + $0xb0] sm:$0xf]
    %v343 = vld [vmem:[#allocation2 + $0xb4] sm:$0xff]
    %v344 = vld [vmem:[#allocation2 + $0xbc] sm:$0xf]
    %v345 = vld [vmem:[#allocation2 + $0xc0] sm:$0xff]
    %v346 = vld [vmem:[#allocation2 + $0xc8] sm:$0xf]
    %v347 = vld [vmem:[#allocation2 + $0xcc] sm:$0xff]
    %v348 = vld [vmem:[#allocation2 + $0xd4] sm:$0xf]
    %v349 = vld [vmem:[#allocation2 + $0xd8] sm:$0xff]
    %v350 = vld [vmem:[#allocation2 + $0xe0] sm:$0xf]
    %v351 = vld [vmem:[#allocation2 + $0xe4] sm:$0xff]
    %v352 = vld [vmem:[#allocation2 + $0xec] sm:$0xf]
    %v353 = vld [vmem:[#allocation2 + $0xf0] sm:$0xff]
    %v354 = vld [vmem:[#allocation2 + $0xf8] sm:$0xf]
    %v355 = vld [vmem:[#allocation2 + $0xfc] sm:$0xff]
    %v356 = vld [vmem:[#allocation2 + $0x104] sm:$0xf]
    %v357 = vld [vmem:[#allocation2 + $0x108] sm:$0xff]
    %v358 = vld [vmem:[#allocation2 + $0x110] sm:$0xf]
    %v359 = vld [vmem:[#allocation2 + $0x114] sm:$0xff]
    %v360 = vld [vmem:[#allocation2 + $0x11c] sm:$0xf]
    %v361 = vld [vmem:[#allocation2 + $0x120] sm:$0xff]
    %v362 = vld [vmem:[#allocation2 + $0x128] sm:$0xf]
    %v363 = vld [vmem:[#allocation2 + $0x12c] sm:$0xff]
    %v364 = vld [vmem:[#allocation2 + $0x134] sm:$0xf]
    %v365 = vld [vmem:[#allocation2 + $0x138] sm:$0xff]
    %v366 = vld [vmem:[#allocation2 + $0x140] sm:$0xf]
    %v367 = vld [vmem:[#allocation2 + $0x144] sm:$0xff]
    %v368 = vld [vmem:[#allocation2 + $0x14c] sm:$0xf]
    %v369 = vld [vmem:[#allocation2 + $0x150] sm:$0xff]
    %v370 = vld [vmem:[#allocation2 + $0x158] sm:$0xf]
    %v371 = vld [vmem:[#allocation2 + $0x15c] sm:$0xff]
    %v372 = vld [vmem:[#allocation2 + $0x164] sm:$0xf]
    %v373 = vld [vmem:[#allocation2 + $0x168] sm:$0xff]
    %v374 = vld [vmem:[#allocation2 + $0x170] sm:$0xf]
    %v375 = vld [vmem:[#allocation2 + $0x174] sm:$0xff]
    %v376 = vld [vmem:[#allocation2 + $0x17c] sm:$0xf]
    %v377 = vld [vmem:[#allocation2 + $0x180] sm:$0xff]
    %v378 = vld [vmem:[#allocation2 + $0x188] sm:$0xf]
    %v379 = vld [vmem:[#allocation2 + $0x18c] sm:$0xff]
    %v380 = vld [vmem:[#allocation2 + $0x194] sm:$0xf]
    %v381 = vld [vmem:[#allocation2 + $0x198] sm:$0xff]
    %v382 = vld [vmem:[#allocation2 + $0x1a0] sm:$0xf]
    %v383 = vld [vmem:[#allocation2 + $0x1a4] sm:$0xff]
    %v384 = vld [vmem:[#allocation2 + $0x1ac] sm:$0xf]
    %v385 = vld [vmem:[#allocation2 + $0x1b0] sm:$0xff]
    %v386 = vld [vmem:[#allocation2 + $0x1b8] sm:$0xf]
    %v387 = vld [vmem:[#allocation2 + $0x1bc] sm:$0xff]
    %v388 = vld [vmem:[#allocation2 + $0x1c4] sm:$0xf]
    %v389 = vld [vmem:[#allocation2 + $0x1c8] sm:$0xff]
    %v390 = vld [vmem:[#allocation2 + $0x1d0] sm:$0xf]
    %v391 = vld [vmem:[#allocation2 + $0x1d4] sm:$0xff]
    %v392 = vld [vmem:[#allocation2 + $0x1dc] sm:$0xf]
    %v393 = vld [vmem:[#allocation2 + $0x1e0] sm:$0xff]
    %v394 = vld [vmem:[#allocation2 + $0x1e8] sm:$0xf]
    %v395 = vld [vmem:[#allocation2 + $0x1ec] sm:$0xff]
    %v396 = vld [vmem:[#allocation2 + $0x1f4] sm:$0xf]
    %v397 = vld [vmem:[#allocation2 + $0x1f8] sm:$0xff]
    %v398 = vld [vmem:[#allocation2 + $0x200] sm:$0xf]
    %v399 = vld [vmem:[#allocation2 + $0x204] sm:$0xff]
    %v400 = vld [vmem:[#allocation2 + $0x20c] sm:$0xf]
    %v401 = vld [vmem:[#allocation2 + $0x210] sm:$0xff]
    %v402 = vld [vmem:[#allocation2 + $0x218] sm:$0xf]
    %v403 = vld [vmem:[#allocation2 + $0x21c] sm:$0xff]
    %v404 = vld [vmem:[#allocation2 + $0x224] sm:$0xf]
    %v405 = vld [vmem:[#allocation2 + $0x228] sm:$0xff]
    %v406 = vld [vmem:[#allocation2 + $0x230] sm:$0xf]
    %v407 = vld [vmem:[#allocation2 + $0x234] sm:$0xff]
    %v408 = vld [vmem:[#allocation2 + $0x23c] sm:$0xf]
    %v409 = vld [vmem:[#allocation2 + $0x240] sm:$0xff]
    %v410 = vld [vmem:[#allocation2 + $0x248] sm:$0xf]
    %v411 = vld [vmem:[#allocation2 + $0x24c] sm:$0xff]
    %v412 = vld [vmem:[#allocation2 + $0x254] sm:$0xf]
    %v413 = vld [vmem:[%s6] sm:$0x7]
    %v415 = vlaneseq
    %v416 = vshrl.u32 %v415, 7
    %v417 = vsub.s32 0, %v416
    %v418 = vrot.slane %v413, %v417
    %v419 = vlaneseq
    %v420 = vshrl.u32 %v419, 7
    %v421 = vsub.s32 1, %v420
    %v422 = vrot.slane %v413, %v421
    %v423 = vlaneseq
    %v424 = vshrl.u32 %v423, 7
    %v425 = vsub.s32 2, %v424
    %v426 = vrot.slane %v413, %v425
    %v530 = vunpack.c.l.b16 %v313
    %v531 = vunpack.c.h.b16 %v313
    %v532 = vunpack.c.l.b16 %v314
    %v533 = vunpack.c.l.b16 %v315
    %v534 = vunpack.c.h.b16 %v315
    %v535 = vunpack.c.l.b16 %v316
    %v536 = vunpack.c.l.b16 %v317
    %v537 = vunpack.c.h.b16 %v317
    %v538 = vunpack.c.l.b16 %v318
    %v539 = vunpack.c.l.b16 %v319
    %v540 = vunpack.c.h.b16 %v319
    %v541 = vunpack.c.l.b16 %v320
    %v542 = vunpack.c.l.b16 %v321
    %v543 = vunpack.c.h.b16 %v321
    %v544 = vunpack.c.l.b16 %v322
    %v545 = vunpack.c.l.b16 %v323
    %v546 = vunpack.c.h.b16 %v323
    %v547 = vunpack.c.l.b16 %v324
    %v548 = vunpack.c.l.b16 %v325
    %v549 = vunpack.c.h.b16 %v325
    %v550 = vunpack.c.l.b16 %v326
    %v551 = vunpack.c.l.b16 %v327
    %v552 = vunpack.c.h.b16 %v327
    %v553 = vunpack.c.l.b16 %v328
    %v554 = vunpack.c.l.b16 %v329
    %v555 = vunpack.c.h.b16 %v329
    %v556 = vunpack.c.l.b16 %v330
    %v557 = vunpack.c.l.b16 %v331
    %v558 = vunpack.c.h.b16 %v331
    %v559 = vunpack.c.l.b16 %v332
    %v560 = vunpack.c.l.b16 %v333
    %v561 = vunpack.c.h.b16 %v333
    %v562 = vunpack.c.l.b16 %v334
    %v563 = vunpack.c.l.b16 %v335
    %v564 = vunpack.c.h.b16 %v335
    %v565 = vunpack.c.l.b16 %v336
    %v566 = vunpack.c.l.b16 %v337
    %v567 = vunpack.c.h.b16 %v337
    %v568 = vunpack.c.l.b16 %v338
    %v569 = vunpack.c.l.b16 %v339
    %v570 = vunpack.c.h.b16 %v339
    %v571 = vunpack.c.l.b16 %v340
    %v572 = vunpack.c.l.b16 %v341
    %v573 = vunpack.c.h.b16 %v341
    %v574 = vunpack.c.l.b16 %v342
    %v575 = vunpack.c.l.b16 %v343
    %v576 = vunpack.c.h.b16 %v343
    %v577 = vunpack.c.l.b16 %v344
    %v578 = vunpack.c.l.b16 %v345
    %v579 = vunpack.c.h.b16 %v345
    %v580 = vunpack.c.l.b16 %v346
    %v581 = vunpack.c.l.b16 %v347
    %v582 = vunpack.c.h.b16 %v347
    %v583 = vunpack.c.l.b16 %v348
    %v584 = vunpack.c.l.b16 %v349
    %v585 = vunpack.c.h.b16 %v349
    %v586 = vunpack.c.l.b16 %v350
    %v587 = vunpack.c.l.b16 %v351
    %v588 = vunpack.c.h.b16 %v351
    %v589 = vunpack.c.l.b16 %v352
    %v590 = vunpack.c.l.b16 %v353
    %v591 = vunpack.c.h.b16 %v353
    %v592 = vunpack.c.l.b16 %v354
    %v593 = vunpack.c.l.b16 %v355
    %v594 = vunpack.c.h.b16 %v355
    %v595 = vunpack.c.l.b16 %v356
    %v596 = vunpack.c.l.b16 %v357
    %v597 = vunpack.c.h.b16 %v357
    %v598 = vunpack.c.l.b16 %v358
    %v599 = vunpack.c.l.b16 %v359
    %v600 = vunpack.c.h.b16 %v359
    %v601 = vunpack.c.l.b16 %v360
    %v602 = vunpack.c.l.b16 %v361
    %v603 = vunpack.c.h.b16 %v361
    %v604 = vunpack.c.l.b16 %v362
    %v605 = vunpack.c.l.b16 %v363
    %v606 = vunpack.c.h.b16 %v363
    %v607 = vunpack.c.l.b16 %v364
    %v608 = vunpack.c.l.b16 %v365
    %v609 = vunpack.c.h.b16 %v365
    %v610 = vunpack.c.l.b16 %v366
    %v611 = vunpack.c.l.b16 %v367
    %v612 = vunpack.c.h.b16 %v367
    %v613 = vunpack.c.l.b16 %v368
    %v614 = vunpack.c.l.b16 %v369
    %v615 = vunpack.c.h.b16 %v369
    %v616 = vunpack.c.l.b16 %v370
    %v617 = vunpack.c.l.b16 %v371
    %v618 = vunpack.c.h.b16 %v371
    %v619 = vunpack.c.l.b16 %v372
    %v620 = vunpack.c.l.b16 %v373
    %v621 = vunpack.c.h.b16 %v373
    %v622 = vunpack.c.l.b16 %v374
    %v623 = vunpack.c.l.b16 %v375
    %v624 = vunpack.c.h.b16 %v375
    %v625 = vunpack.c.l.b16 %v376
    %v626 = vunpack.c.l.b16 %v377
    %v627 = vunpack.c.h.b16 %v377
    %v628 = vunpack.c.l.b16 %v378
    %v629 = vunpack.c.l.b16 %v379
    %v630 = vunpack.c.h.b16 %v379
    %v631 = vunpack.c.l.b16 %v380
    %v632 = vunpack.c.l.b16 %v381
    %v633 = vunpack.c.h.b16 %v381
    %v634 = vunpack.c.l.b16 %v382
    %v635 = vunpack.c.l.b16 %v383
    %v636 = vunpack.c.h.b16 %v383
    %v637 = vunpack.c.l.b16 %v384
    %v638 = vunpack.c.l.b16 %v385
    %v639 = vunpack.c.h.b16 %v385
    %v640 = vunpack.c.l.b16 %v386
    %v641 = vunpack.c.l.b16 %v387
    %v642 = vunpack.c.h.b16 %v387
    %v643 = vunpack.c.l.b16 %v388
    %v644 = vunpack.c.l.b16 %v389
    %v645 = vunpack.c.h.b16 %v389
    %v646 = vunpack.c.l.b16 %v390
    %v647 = vunpack.c.l.b16 %v391
    %v648 = vunpack.c.h.b16 %v391
    %v649 = vunpack.c.l.b16 %v392
    %v650 = vunpack.c.l.b16 %v393
    %v651 = vunpack.c.h.b16 %v393
    %v652 = vunpack.c.l.b16 %v394
    %v653 = vunpack.c.l.b16 %v395
    %v654 = vunpack.c.h.b16 %v395
    %v655 = vunpack.c.l.b16 %v396
    %v656 = vunpack.c.l.b16 %v397
    %v657 = vunpack.c.h.b16 %v397
    %v658 = vunpack.c.l.b16 %v398
    %v659 = vunpack.c.l.b16 %v399
    %v660 = vunpack.c.h.b16 %v399
    %v661 = vunpack.c.l.b16 %v400
    %v662 = vunpack.c.l.b16 %v401
    %v663 = vunpack.c.h.b16 %v401
    %v664 = vunpack.c.l.b16 %v402
    %v665 = vunpack.c.l.b16 %v403
    %v666 = vunpack.c.h.b16 %v403
    %v667 = vunpack.c.l.b16 %v404
    %v668 = vunpack.c.l.b16 %v405
    %v669 = vunpack.c.h.b16 %v405
    %v670 = vunpack.c.l.b16 %v406
    %v671 = vunpack.c.l.b16 %v407
    %v672 = vunpack.c.h.b16 %v407
    %v673 = vunpack.c.l.b16 %v408
    %v674 = vunpack.c.l.b16 %v409
    %v675 = vunpack.c.h.b16 %v409
    %v676 = vunpack.c.l.b16 %v410
    %v677 = vunpack.c.l.b16 %v411
    %v678 = vunpack.c.h.b16 %v411
    %v679 = vunpack.c.l.b16 %v412
    %v680 = vpack.c.b16 %v533, %v530
    %v681 = vpack.c.b16 %v534, %v531
    %v682 = vpack.c.b16 %v535, %v532
    %v683 = vpack.c.b16 %v539, %v536
    %v684 = vpack.c.b16 %v540, %v537
    %v685 = vpack.c.b16 %v541, %v538
    %v686 = vpack.c.b16 %v545, %v542
    %v687 = vpack.c.b16 %v546, %v543
    %v688 = vpack.c.b16 %v547, %v544
    %v689 = vpack.c.b16 %v551, %v548
    %v690 = vpack.c.b16 %v552, %v549
    %v691 = vpack.c.b16 %v553, %v550
    %v692 = vpack.c.b16 %v557, %v554
    %v693 = vpack.c.b16 %v558, %v555
    %v694 = vpack.c.b16 %v559, %v556
    %v695 = vpack.c.b16 %v563, %v560
    %v696 = vpack.c.b16 %v564, %v561
    %v697 = vpack.c.b16 %v565, %v562
    %v698 = vpack.c.b16 %v569, %v566
    %v699 = vpack.c.b16 %v570, %v567
    %v700 = vpack.c.b16 %v571, %v568
    %v701 = vpack.c.b16 %v575, %v572
    %v702 = vpack.c.b16 %v576, %v573
    %v703 = vpack.c.b16 %v577, %v574
    %v704 = vpack.c.b16 %v581, %v578
    %v705 = vpack.c.b16 %v582, %v579
    %v706 = vpack.c.b16 %v583, %v580
    %v707 = vpack.c.b16 %v587, %v584
    %v708 = vpack.c.b16 %v588, %v585
    %v709 = vpack.c.b16 %v589, %v586
    %v710 = vpack.c.b16 %v593, %v590
    %v711 = vpack.c.b16 %v594, %v591
    %v712 = vpack.c.b16 %v595, %v592
    %v713 = vpack.c.b16 %v599, %v596
    %v714 = vpack.c.b16 %v600, %v597
    %v715 = vpack.c.b16 %v601, %v598
    %v716 = vpack.c.b16 %v605, %v602
    %v717 = vpack.c.b16 %v606, %v603
    %v718 = vpack.c.b16 %v607, %v604
    %v719 = vpack.c.b16 %v611, %v608
    %v720 = vpack.c.b16 %v612, %v609
    %v721 = vpack.c.b16 %v613, %v610
    %v722 = vpack.c.b16 %v617, %v614
    %v723 = vpack.c.b16 %v618, %v615
    %v724 = vpack.c.b16 %v619, %v616
    %v725 = vpack.c.b16 %v623, %v620
    %v726 = vpack.c.b16 %v624, %v621
    %v727 = vpack.c.b16 %v625, %v622
    %v728 = vpack.c.b16 %v629, %v626
    %v729 = vpack.c.b16 %v630, %v627
    %v730 = vpack.c.b16 %v631, %v628
    %v731 = vpack.c.b16 %v635, %v632
    %v732 = vpack.c.b16 %v636, %v633
    %v733 = vpack.c.b16 %v637, %v634
    %v734 = vpack.c.b16 %v641, %v638
    %v735 = vpack.c.b16 %v642, %v639
    %v736 = vpack.c.b16 %v643, %v640
    %v737 = vpack.c.b16 %v647, %v644
    %v738 = vpack.c.b16 %v648, %v645
    %v739 = vpack.c.b16 %v649, %v646
    %v740 = vpack.c.b16 %v653, %v650
    %v741 = vpack.c.b16 %v654, %v651
    %v742 = vpack.c.b16 %v655, %v652
    %v743 = vpack.c.b16 %v659, %v656
    %v744 = vpack.c.b16 %v660, %v657
    %v745 = vpack.c.b16 %v661, %v658
    %v746 = vpack.c.b16 %v665, %v662
    %v747 = vpack.c.b16 %v666, %v663
    %v748 = vpack.c.b16 %v667, %v664
    %v749 = vpack.c.b16 %v671, %v668
    %v750 = vpack.c.b16 %v672, %v669
    %v751 = vpack.c.b16 %v673, %v670
    %v752 = vpack.c.b16 %v677, %v674
    %v753 = vpack.c.b16 %v678, %v675
    %v754 = vpack.c.b16 %v679, %v676
    %v831 = vsel %vm193, %v312, 0
    %833 = vmatprep.subr.bf16.mxu0 %v681
    %834 = vmatpush1.bf16.msra.mxu0 %v680
    %835 = vmatprep.subr.bf16.mxu0 %v684
    %836 = vmatpush1.bf16.msra.mxu0 %v683
    %837 = vmatprep.subr.bf16.mxu0 %v687
    %838 = vmatpush1.bf16.msra.mxu0 %v686
    %839 = vmatprep.subr.bf16.mxu0 %v690
    %840 = vmatpush1.bf16.msra.mxu0 %v689
    %841 = vmatprep.subr.bf16.mxu0 %v693
    %842 = vmatpush1.bf16.msra.mxu0 %v692
    %843 = vmatprep.subr.bf16.mxu0 %v696
    %844 = vmatpush1.bf16.msra.mxu0 %v695
    %845 = vmatprep.subr.bf16.mxu0 %v699
    %846 = vmatpush1.bf16.msra.mxu0 %v698
    %847 = vmatprep.subr.bf16.mxu0 %v702
    %848 = vmatpush1.bf16.msra.mxu0 %v701
    %849 = vmatprep.subr.bf16.mxu0 %v705
    %850 = vmatpush1.bf16.msra.mxu0 %v704
    %851 = vmatprep.subr.bf16.mxu0 %v708
    %852 = vmatpush1.bf16.msra.mxu0 %v707
    %853 = vmatprep.subr.bf16.mxu0 %v711
    %854 = vmatpush1.bf16.msra.mxu0 %v710
    %855 = vmatprep.subr.bf16.mxu0 %v714
    %856 = vmatpush1.bf16.msra.mxu0 %v713
    %857 = vmatprep.subr.bf16.mxu0 %v717
    %858 = vmatpush1.bf16.msra.mxu0 %v716
    %859 = vmatprep.subr.bf16.mxu0 %v720
    %860 = vmatpush1.bf16.msra.mxu0 %v719
    %861 = vmatprep.subr.bf16.mxu0 %v723
    %862 = vmatpush1.bf16.msra.mxu0 %v722
    %863 = vmatprep.subr.bf16.mxu0 %v726
    %864 = vmatpush1.bf16.msra.mxu0 %v725
    %865 = vmatprep.mubr.bf16.mxu0 %v310
    %866 = vmatmul.mubr.bf16.gmra.mrb[0].mxu0 %v309
    %v867 = vpop.f32.mrb[0].mxu0
    %v868 = vadd.f32 %v418, %v867
    %v869 = vpop.f32.mrb[0].mxu0
    %v870 = vadd.f32 %v422, %v869
    %v871 = vpop.f32.mrb[0].mxu0
    %v872 = vpop.f32.mrb[0].mxu0
    %873 = vdwg.mxu0
    %874 = vmatprep.subr.bf16.mxu0 %v729
    %875 = vmatpush1.bf16.msra.mxu0 %v728
    %876 = vmatprep.subr.bf16.mxu0 %v732
    %877 = vmatpush1.bf16.msra.mxu0 %v731
    %878 = vmatprep.subr.bf16.mxu0 %v735
    %879 = vmatpush1.bf16.msra.mxu0 %v734
    %880 = vmatprep.subr.bf16.mxu0 %v738
    %881 = vmatpush1.bf16.msra.mxu0 %v737
    %882 = vmatprep.subr.bf16.mxu0 %v741
    %883 = vmatpush1.bf16.msra.mxu0 %v740
    %884 = vmatprep.subr.bf16.mxu0 %v744
    %885 = vmatpush1.bf16.msra.mxu0 %v743
    %886 = vmatprep.subr.bf16.mxu0 %v747
    %887 = vmatpush1.bf16.msra.mxu0 %v746
    %888 = vmatprep.subr.bf16.mxu0 %v750
    %889 = vmatpush1.bf16.msra.mxu0 %v749
    %890 = vmatprep.subr.bf16.mxu0 %v753
    %891 = vmatpush1.bf16.msra.mxu0 %v752
    %892 = vmatprep.subr.bf16.mxu0 0
    %893 = vmatpush1.bf16.msra.mxu0 0
    %894 = vmatprep.subr.bf16.mxu0 0
    %895 = vmatpush1.bf16.msra.mxu0 0
    %896 = vmatprep.subr.bf16.mxu0 0
    %897 = vmatpush1.bf16.msra.mxu0 0
    %898 = vmatprep.subr.bf16.mxu0 0
    %899 = vmatpush1.bf16.msra.mxu0 0
    %900 = vmatprep.subr.bf16.mxu0 0
    %901 = vmatpush1.bf16.msra.mxu0 0
    %902 = vmatprep.subr.bf16.mxu0 0
    %903 = vmatpush1.bf16.msra.mxu0 0
    %904 = vmatprep.subr.bf16.mxu0 0
    %905 = vmatpush1.bf16.msra.mxu0 0
    %906 = vmatprep.mubr.bf16.mxu0 %v831
    %907 = vmatmul.mubr.bf16.gmra.mrb[0].mxu0 %v311
    %v908 = vpop.f32.mrb[0].mxu0
    %v909 = vadd.f32 %v868, %v908
    %v910 = vpop.f32.mrb[0].mxu0
    %v911 = vadd.f32 %v870, %v910
    %v912 = vpop.f32.mrb[0].mxu0
    %v913 = vpop.f32.mrb[0].mxu0
    %914 = vdwg.mxu0
    %915 = vmatprep.subr.bf16.mxu0 0
    %916 = vmatpush1.bf16.msra.mxu0 %v682
    %917 = vmatprep.subr.bf16.mxu0 0
    %918 = vmatpush1.bf16.msra.mxu0 %v685
    %919 = vmatprep.subr.bf16.mxu0 0
    %920 = vmatpush1.bf16.msra.mxu0 %v688
    %921 = vmatprep.subr.bf16.mxu0 0
    %922 = vmatpush1.bf16.msra.mxu0 %v691
    %923 = vmatprep.subr.bf16.mxu0 0
    %924 = vmatpush1.bf16.msra.mxu0 %v694
    %925 = vmatprep.subr.bf16.mxu0 0
    %926 = vmatpush1.bf16.msra.mxu0 %v697
    %927 = vmatprep.subr.bf16.mxu0 0
    %928 = vmatpush1.bf16.msra.mxu0 %v700
    %929 = vmatprep.subr.bf16.mxu0 0
    %930 = vmatpush1.bf16.msra.mxu0 %v703
    %931 = vmatprep.subr.bf16.mxu0 0
    %932 = vmatpush1.bf16.msra.mxu0 %v706
    %933 = vmatprep.subr.bf16.mxu0 0
    %934 = vmatpush1.bf16.msra.mxu0 %v709
    %935 = vmatprep.subr.bf16.mxu0 0
    %936 = vmatpush1.bf16.msra.mxu0 %v712
    %937 = vmatprep.subr.bf16.mxu0 0
    %938 = vmatpush1.bf16.msra.mxu0 %v715
    %939 = vmatprep.subr.bf16.mxu0 0
    %940 = vmatpush1.bf16.msra.mxu0 %v718
    %941 = vmatprep.subr.bf16.mxu0 0
    %942 = vmatpush1.bf16.msra.mxu0 %v721
    %943 = vmatprep.subr.bf16.mxu0 0
    %944 = vmatpush1.bf16.msra.mxu0 %v724
    %945 = vmatprep.subr.bf16.mxu0 0
    %946 = vmatpush1.bf16.msra.mxu0 %v727
    %947 = vmatprep.mubr.bf16.mxu0 %v310
    %948 = vmatmul.mubr.bf16.gmra.mrb[0].mxu0 %v309
    %v949 = vpop.f32.mrb[0].mxu0
    %v950 = vadd.f32 %v426, %v949
    %v951 = vpop.f32.mrb[0].mxu0
    %v952 = vpop.f32.mrb[0].mxu0
    %v953 = vpop.f32.mrb[0].mxu0
    %954 = vdwg.mxu0
    %955 = vmatprep.subr.bf16.mxu0 0
    %956 = vmatpush1.bf16.msra.mxu0 %v730
    %957 = vmatprep.subr.bf16.mxu0 0
    %958 = vmatpush1.bf16.msra.mxu0 %v733
    %959 = vmatprep.subr.bf16.mxu0 0
    %960 = vmatpush1.bf16.msra.mxu0 %v736
    %961 = vmatprep.subr.bf16.mxu0 0
    %962 = vmatpush1.bf16.msra.mxu0 %v739
    %963 = vmatprep.subr.bf16.mxu0 0
    %964 = vmatpush1.bf16.msra.mxu0 %v742
    %965 = vmatprep.subr.bf16.mxu0 0
    %966 = vmatpush1.bf16.msra.mxu0 %v745
    %967 = vmatprep.subr.bf16.mxu0 0
    %968 = vmatpush1.bf16.msra.mxu0 %v748
    %969 = vmatprep.subr.bf16.mxu0 0
    %970 = vmatpush1.bf16.msra.mxu0 %v751
    %971 = vmatprep.subr.bf16.mxu0 0
    %972 = vmatpush1.bf16.msra.mxu0 %v754
    %973 = vmatprep.subr.bf16.mxu0 0
    %974 = vmatpush1.bf16.msra.mxu0 0
    %975 = vmatprep.subr.bf16.mxu0 0
    %976 = vmatpush1.bf16.msra.mxu0 0
    %977 = vmatprep.subr.bf16.mxu0 0
    %978 = vmatpush1.bf16.msra.mxu0 0
    %979 = vmatprep.subr.bf16.mxu0 0
    %980 = vmatpush1.bf16.msra.mxu0 0
    %981 = vmatprep.subr.bf16.mxu0 0
    %982 = vmatpush1.bf16.msra.mxu0 0
    %983 = vmatprep.subr.bf16.mxu0 0
    %984 = vmatpush1.bf16.msra.mxu0 0
    %985 = vmatprep.subr.bf16.mxu0 0
    %986 = vmatpush1.bf16.msra.mxu0 0
    %987 = vmatprep.mubr.bf16.mxu0 %v831
    %988 = vmatmul.mubr.bf16.gmra.mrb[0].mxu0 %v311
    %v989 = vpop.f32.mrb[0].mxu0
    %v990 = vadd.f32 %v950, %v989
    %v991 = vpop.f32.mrb[0].mxu0
    %v992 = vpop.f32.mrb[0].mxu0
    %v993 = vpop.f32.mrb[0].mxu0
    %994 = vdwg.mxu0
    %v995 = vmax.f32 %v909, 0.0
    %v996 = vmax.f32 %v911, 0.0
    %v997 = vmax.f32 %v990, 0.0
    %v998 = vpack.c.bf16 %v995, %v995
    %v999 = vpack.c.bf16 %v996, %v996
    %v1000 = vpack.c.bf16 %v997, %v997
    %v1001 = vld [vmem:[%s7] sm:$0xf]
    %v1002 = vld [vmem:[%s7 + $0x4] sm:$0xf]
    %v1003 = vld [vmem:[%s7 + $0x8] sm:$0xf]
    %v1004 = vld [vmem:[%s7 + $0xc] sm:$0xf]
    %v1005 = vld [vmem:[%s7 + $0x10] sm:$0xf]
    %v1006 = vld [vmem:[%s7 + $0x14] sm:$0xf]
    %v1007 = vld [vmem:[%s7 + $0x18] sm:$0xf]
    %v1008 = vld [vmem:[%s7 + $0x1c] sm:$0xf]
    %v1009 = vld [vmem:[%s7 + $0x20] sm:$0xf]
    %v1010 = vld [vmem:[%s7 + $0x24] sm:$0xf]
    %v1011 = vld [vmem:[%s7 + $0x28] sm:$0xf]
    %v1012 = vld [vmem:[%s7 + $0x2c] sm:$0xf]
    %v1013 = vld [vmem:[%s7 + $0x30] sm:$0xf]
    %v1014 = vld [vmem:[%s7 + $0x34] sm:$0xf]
    %v1015 = vld [vmem:[%s7 + $0x38] sm:$0xf]
    %v1016 = vld [vmem:[%s7 + $0x3c] sm:$0xf]
    %v1017 = vld [vmem:[%s7 + $0x40] sm:$0xf]
    %v1018 = vld [vmem:[%s7 + $0x44] sm:$0xf]
    %v1019 = vld [vmem:[%s7 + $0x48] sm:$0xf]
    %v1020 = vld [vmem:[%s7 + $0x4c] sm:$0xf]
    %v1021 = vld [vmem:[%s7 + $0x50] sm:$0xf]
    %v1022 = vld [vmem:[%s7 + $0x54] sm:$0xf]
    %v1023 = vld [vmem:[%s7 + $0x58] sm:$0xf]
    %v1024 = vld [vmem:[%s7 + $0x5c] sm:$0xf]
    %v1025 = vld [vmem:[%s7 + $0x60] sm:$0xf]
    %v1026 = vld [vmem:[%s7 + $0x64] sm:$0xf]
    %v1027 = vld [vmem:[%s7 + $0x68] sm:$0xf]
    %v1028 = vld [vmem:[%s7 + $0x6c] sm:$0xf]
    %v1029 = vld [vmem:[%s7 + $0x70] sm:$0xf]
    %v1030 = vld [vmem:[%s7 + $0x74] sm:$0xf]
    %v1031 = vld [vmem:[%s7 + $0x78] sm:$0xf]
    %v1032 = vld [vmem:[%s7 + $0x7c] sm:$0xf]
    %v1033 = vld [vmem:[%s7 + $0x80] sm:$0xf]
    %v1034 = vld [vmem:[%s7 + $0x84] sm:$0xf]
    %v1035 = vld [vmem:[%s7 + $0x88] sm:$0xf]
    %v1036 = vld [vmem:[%s7 + $0x8c] sm:$0xf]
    %v1037 = vld [vmem:[%s7 + $0x90] sm:$0xf]
    %v1038 = vld [vmem:[%s7 + $0x94] sm:$0x3]
    %v1039 = vld [vmem:[%s8] sm:$0x1]
    %v1041 = vlaneseq
    %v1042 = vshrl.u32 %v1041, 7
    %v1043 = vsub.s32 0, %v1042
    %v1044 = vrot.slane %v1039, %v1043
    %v1084 = vunpack.c.l.b16 %v1001
    %v1085 = vunpack.c.l.b16 %v1002
    %v1086 = vunpack.c.l.b16 %v1003
    %v1087 = vunpack.c.l.b16 %v1004
    %v1088 = vunpack.c.l.b16 %v1005
    %v1089 = vunpack.c.l.b16 %v1006
    %v1090 = vunpack.c.l.b16 %v1007
    %v1091 = vunpack.c.l.b16 %v1008
    %v1092 = vunpack.c.l.b16 %v1009
    %v1093 = vunpack.c.l.b16 %v1010
    %v1094 = vunpack.c.l.b16 %v1011
    %v1095 = vunpack.c.l.b16 %v1012
    %v1096 = vunpack.c.l.b16 %v1013
    %v1097 = vunpack.c.l.b16 %v1014
    %v1098 = vunpack.c.l.b16 %v1015
    %v1099 = vunpack.c.l.b16 %v1016
    %v1100 = vunpack.c.l.b16 %v1017
    %v1101 = vunpack.c.l.b16 %v1018
    %v1102 = vunpack.c.l.b16 %v1019
    %v1103 = vunpack.c.l.b16 %v1020
    %v1104 = vunpack.c.l.b16 %v1021
    %v1105 = vunpack.c.l.b16 %v1022
    %v1106 = vunpack.c.l.b16 %v1023
    %v1107 = vunpack.c.l.b16 %v1024
    %v1108 = vunpack.c.l.b16 %v1025
    %v1109 = vunpack.c.l.b16 %v1026
    %v1110 = vunpack.c.l.b16 %v1027
    %v1111 = vunpack.c.l.b16 %v1028
    %v1112 = vunpack.c.l.b16 %v1029
    %v1113 = vunpack.c.l.b16 %v1030
    %v1114 = vunpack.c.l.b16 %v1031
    %v1115 = vunpack.c.l.b16 %v1032
    %v1116 = vunpack.c.l.b16 %v1033
    %v1117 = vunpack.c.l.b16 %v1034
    %v1118 = vunpack.c.l.b16 %v1035
    %v1119 = vunpack.c.l.b16 %v1036
    %v1120 = vunpack.c.l.b16 %v1037
    %v1121 = vunpack.c.l.b16 %v1038
    %v1122 = vpack.c.b16 %v1085, %v1084
    %v1123 = vpack.c.b16 %v1087, %v1086
    %v1124 = vpack.c.b16 %v1089, %v1088
    %v1125 = vpack.c.b16 %v1091, %v1090
    %v1126 = vpack.c.b16 %v1093, %v1092
    %v1127 = vpack.c.b16 %v1095, %v1094
    %v1128 = vpack.c.b16 %v1097, %v1096
    %v1129 = vpack.c.b16 %v1099, %v1098
    %v1130 = vpack.c.b16 %v1101, %v1100
    %v1131 = vpack.c.b16 %v1103, %v1102
    %v1132 = vpack.c.b16 %v1105, %v1104
    %v1133 = vpack.c.b16 %v1107, %v1106
    %v1134 = vpack.c.b16 %v1109, %v1108
    %v1135 = vpack.c.b16 %v1111, %v1110
    %v1136 = vpack.c.b16 %v1113, %v1112
    %v1137 = vpack.c.b16 %v1115, %v1114
    %v1138 = vpack.c.b16 %v1117, %v1116
    %v1139 = vpack.c.b16 %v1119, %v1118
    %v1140 = vpack.c.b16 %v1121, %v1120
    %vm1159 = vcmask 359424
    %v1161 = vsel %vm1159, %v1000, 0
    %vm1163 = vcmask 1045504
    %v1165 = vsel %vm1163, %v1140, 0
    %1167 = vmatprep.subr.bf16.mxu0 0
    %1168 = vmatpush1.bf16.msra.mxu0 %v1122
    %1169 = vmatprep.subr.bf16.mxu0 0
    %1170 = vmatpush1.bf16.msra.mxu0 %v1123
    %1171 = vmatprep.subr.bf16.mxu0 0
    %1172 = vmatpush1.bf16.msra.mxu0 %v1124
    %1173 = vmatprep.subr.bf16.mxu0 0
    %1174 = vmatpush1.bf16.msra.mxu0 %v1125
    %1175 = vmatprep.subr.bf16.mxu0 0
    %1176 = vmatpush1.bf16.msra.mxu0 %v1126
    %1177 = vmatprep.subr.bf16.mxu0 0
    %1178 = vmatpush1.bf16.msra.mxu0 %v1127
    %1179 = vmatprep.subr.bf16.mxu0 0
    %1180 = vmatpush1.bf16.msra.mxu0 %v1128
    %1181 = vmatprep.subr.bf16.mxu0 0
    %1182 = vmatpush1.bf16.msra.mxu0 %v1129
    %1183 = vmatprep.subr.bf16.mxu0 0
    %1184 = vmatpush1.bf16.msra.mxu0 %v1130
    %1185 = vmatprep.subr.bf16.mxu0 0
    %1186 = vmatpush1.bf16.msra.mxu0 %v1131
    %1187 = vmatprep.subr.bf16.mxu0 0
    %1188 = vmatpush1.bf16.msra.mxu0 %v1132
    %1189 = vmatprep.subr.bf16.mxu0 0
    %1190 = vmatpush1.bf16.msra.mxu0 %v1133
    %1191 = vmatprep.subr.bf16.mxu0 0
    %1192 = vmatpush1.bf16.msra.mxu0 %v1134
    %1193 = vmatprep.subr.bf16.mxu0 0
    %1194 = vmatpush1.bf16.msra.mxu0 %v1135
    %1195 = vmatprep.subr.bf16.mxu0 0
    %1196 = vmatpush1.bf16.msra.mxu0 %v1136
    %1197 = vmatprep.subr.bf16.mxu0 0
    %1198 = vmatpush1.bf16.msra.mxu0 %v1137
    %1199 = vmatprep.mubr.bf16.mxu0 %v999
    %1200 = vmatmul.mubr.bf16.gmra.mrb[0].mxu0 %v998
    %v1201 = vpop.f32.mrb[0].mxu0
    %v1202 = vadd.f32 %v1044, %v1201
    %v1203 = vpop.f32.mrb[0].mxu0
    %v1204 = vpop.f32.mrb[0].mxu0
    %v1205 = vpop.f32.mrb[0].mxu0
    %1206 = vdwg.mxu0
    %1207 = vmatprep.subr.bf16.mxu0 0
    %1208 = vmatpush1.bf16.msra.mxu0 %v1138
    %1209 = vmatprep.subr.bf16.mxu0 0
    %1210 = vmatpush1.bf16.msra.mxu0 %v1139
    %1211 = vmatprep.subr.bf16.mxu0 0
    %1212 = vmatpush1.bf16.msra.mxu0 %v1165
    %1213 = vmatprep.subr.bf16.mxu0 0
    %1214 = vmatpush1.bf16.msra.mxu0 0
    %1215 = vmatprep.subr.bf16.mxu0 0
    %1216 = vmatpush1.bf16.msra.mxu0 0
    %1217 = vmatprep.subr.bf16.mxu0 0
    %1218 = vmatpush1.bf16.msra.mxu0 0
    %1219 = vmatprep.subr.bf16.mxu0 0
    %1220 = vmatpush1.bf16.msra.mxu0 0
    %1221 = vmatprep.subr.bf16.mxu0 0
    %1222 = vmatpush1.bf16.msra.mxu0 0
    %1223 = vmatprep.subr.bf16.mxu0 0
    %1224 = vmatpush1.bf16.msra.mxu0 0
    %1225 = vmatprep.subr.bf16.mxu0 0
    %1226 = vmatpush1.bf16.msra.mxu0 0
    %1227 = vmatprep.subr.bf16.mxu0 0
    %1228 = vmatpush1.bf16.msra.mxu0 0
    %1229 = vmatprep.subr.bf16.mxu0 0
    %1230 = vmatpush1.bf16.msra.mxu0 0
    %1231 = vmatprep.subr.bf16.mxu0 0
    %1232 = vmatpush1.bf16.msra.mxu0 0
    %1233 = vmatprep.subr.bf16.mxu0 0
    %1234 = vmatpush1.bf16.msra.mxu0 0
    %1235 = vmatprep.subr.bf16.mxu0 0
    %1236 = vmatpush1.bf16.msra.mxu0 0
    %1237 = vmatprep.subr.bf16.mxu0 0
    %1238 = vmatpush1.bf16.msra.mxu0 0
    %1239 = vmatprep.mubr.bf16.mxu0 0
    %1240 = vmatmul.mubr.bf16.gmra.mrb[0].mxu0 %v1161
    %v1241 = vpop.f32.mrb[0].mxu0
    %v1242 = vadd.f32 %v1202, %v1241
    %v1243 = vpop.f32.mrb[0].mxu0
    %v1244 = vpop.f32.mrb[0].mxu0
    %v1245 = vpop.f32.mrb[0].mxu0
    %1246 = vdwg.mxu0
    %v1247 = vtanh.pop %v1242
    %v1248 = vmul.f32 %v1247, 0.05
    %v1249 = vadd.f32 %v49, %v1248
    %v1250 = vmax.f32 %v1249, -1.0
    %v1251 = vmin.f32 %v1250, 1.0
    %1252 = vst.msk [vmem:[%s9] sm:$0xff] %vm74, %v1251
    // Predicated region
    $region42: #{tpu_custom_call.1} parent=1 // pred_check
      _
    $region43: #{tpu_custom_call.1} parent=1 // pred_check_branch
      %1254 = sbr.rel (0) target = $region45
    $region44: #{tpu_custom_call.1} parent=1 // pred_region
      _
    $region45: #{tpu_custom_call.1} parent=1 // pred_fallthru
      _
    // Predicated region
    $region46: #{tpu_custom_call.1} parent=1 // pred_check
      _
    $region47: #{tpu_custom_call.1} parent=1 // pred_check_branch
      %1256 = sbr.rel (0) target = $region49
    $region48: #{tpu_custom_call.1} parent=1 // pred_region
      _
    $region49: #{tpu_custom_call.1} parent=1 // pred_fallthru
      _
    %1257 = vsyncpa [#allocation3], 1

</llo_original>
